<compile_context>
chip_gen: v7x
topology: tpu7x:2x2x1
jax: 0.10.0
libtpu: 0.0.40
codegen_flags: <defaults>
</compile_context>

<pallas_src>
import functools

import jax
import jax.numpy as jnp
from jax.experimental import pallas as pl
from jax.experimental.pallas import tpu as pltpu

_BF16 = jnp.bfloat16


def _round_up(x, m):
    return ((x + m - 1) // m) * m


def _pick_tm(m, k_cols, n_cols):
    """Largest M tile (<=1024) subject to:
       - a conservative per-step bf16 VMEM budget (safe for v7x's 64 MiB),
       - >= 2 grid steps once there are enough rows (v7x has 2 TensorCores),
       - tm <= padded row count (never a block bigger than the array)."""
    m8 = _round_up(max(m, 8), 8)
    budget = 20 << 20
    cap = max(128, _round_up(m8, 256) // 2) if m8 >= 256 else m8
    tm = 1024
    while tm > 8 and (tm > cap or 2 * tm * (k_cols + n_cols + 8) * 2 > budget):
        tm //= 2
    return max(tm, 8)


def _mosaic_params(tm, bf16_cols, f32_cols, weight_bytes):
    # double-buffered activation tiles + (once-fetched) weights + headroom;
    # itemsize is 2 for the bf16 activations after the HBM-side pre-cast.
    est = 2 * tm * (2 * bf16_cols + 4 * f32_cols) + 2 * weight_bytes + (8 << 20)
    return pltpu.CompilerParams(
        dimension_semantics=("parallel",),
        vmem_limit_bytes=int(min(max(est, 16 << 20), 40 << 20)),
    )


def _pad_rows(x, m_pad):
    m = x.shape[0]
    if m_pad == m:
        return x
    return jnp.pad(x, ((0, m_pad - m),) + ((0, 0),) * (x.ndim - 1))


# ----------------------------------------------------------------------------
# Pallas kernels (bf16 activations/weights in VMEM, f32 MXU accumulate)
# ----------------------------------------------------------------------------
def _masked_linear_act_kernel(x_ref, m_ref, w_ref, b_ref, o_ref, *, activation):
    """o = act((x * row_mask) @ w + b); x/w bf16, mask/bias f32, accumulate f32."""
    x = x_ref[...] * m_ref[...].astype(x_ref.dtype)          # (tm, K) bf16
    acc = jnp.dot(x, w_ref[...], preferred_element_type=jnp.float32) + b_ref[...]
    if activation == "tanh":
        acc = jnp.tanh(acc)
    elif activation == "relu":
        acc = jnp.maximum(acc, 0.0)
    o_ref[...] = acc.astype(o_ref.dtype)


def _decoder_fused_kernel(x_ref, z_ref, w1_ref, b1_ref, w2_ref, b2_ref, o_ref):
    """Fused QA decoder: (emb * token_z) -> relu MLP -> padded 128-wide head.
    The (tm, H) hidden stays in VMEM/vregs; never round-trips HBM."""
    x = x_ref[...] * z_ref[...].astype(x_ref.dtype)
    h = jnp.dot(x, w1_ref[...], preferred_element_type=jnp.float32) + b1_ref[...]
    h = jnp.maximum(h, 0.0)
    out = jnp.dot(h.astype(x_ref.dtype), w2_ref[...],
                  preferred_element_type=jnp.float32) + b2_ref[...]
    o_ref[...] = out.astype(o_ref.dtype)                      # bf16 writeback


def _ctx_proj_sent_logits_kernel(c_ref, qp_ref, cw_ref, cb_ref, o_ref):
    """context projection + per-row dot with the (pre-computed) question proj."""
    cp = jnp.dot(c_ref[...], cw_ref[...], preferred_element_type=jnp.float32) + cb_ref[...]
    o_ref[...] = jnp.sum(cp * qp_ref[...], axis=-1, keepdims=True).astype(o_ref.dtype)


# ----------------------------------------------------------------------------
# Pallas wrappers
# ----------------------------------------------------------------------------
def masked_linear_act(x, row_mask, w, b, activation="none", out_dtype=jnp.float32):
    """act((x * row_mask) @ w + b).  x: (M, K) bf16, row_mask: (M, 1) f32."""
    M, K = x.shape
    N = w.shape[1]
    tm = _pick_tm(M, K, N)
    m_pad = _round_up(M, 8)                 # tiny pad only; no full-tile copy
    x = _pad_rows(x, m_pad)
    row_mask = _pad_rows(row_mask, m_pad)
    out = pl.pallas_call(
        functools.partial(_masked_linear_act_kernel, activation=activation),
        out_shape=jax.ShapeDtypeStruct((m_pad, N), out_dtype),
        grid=(pl.cdiv(m_pad, tm),),
        in_specs=[
            pl.BlockSpec((tm, K), lambda i: (i, 0)),
            pl.BlockSpec((tm, 1), lambda i: (i, 0)),
            pl.BlockSpec((K, N), lambda i: (0, 0)),
            pl.BlockSpec((1, N), lambda i: (0, 0)),
        ],
        out_specs=pl.BlockSpec((tm, N), lambda i: (i, 0)),
        compiler_params=_mosaic_params(tm, K + N, 2, K * N * 2 + N * 4),
    )(x, row_mask, w, b.reshape(1, N))
    return out[:M]


def qa_decoder_fused(x, token_z, w1, b1, w2p, b2p):
    """Fused decoder MLP + padded lane-dense logit head (bf16 output).
    Returns (start_logits, end_logits) as f32 (M,)."""
    M, E = x.shape
    H = w1.shape[1]
    NPAD = w2p.shape[1]                     # 128 (cols 0/1 = start/end logits)
    tm = _pick_tm(M, E, max(H, NPAD))
    m_pad = _round_up(M, 8)
    x = _pad_rows(x, m_pad)
    token_z = _pad_rows(token_z, m_pad)
    out = pl.pallas_call(
        _decoder_fused_kernel,
        out_shape=jax.ShapeDtypeStruct((m_pad, NPAD), _BF16),
        grid=(pl.cdiv(m_pad, tm),),
        in_specs=[
            pl.BlockSpec((tm, E), lambda i: (i, 0)),
            pl.BlockSpec((tm, 1), lambda i: (i, 0)),
            pl.BlockSpec((E, H), lambda i: (0, 0)),
            pl.BlockSpec((1, H), lambda i: (0, 0)),
            pl.BlockSpec((H, NPAD), lambda i: (0, 0)),
            pl.BlockSpec((1, NPAD), lambda i: (0, 0)),
        ],
        out_specs=pl.BlockSpec((tm, NPAD), lambda i: (i, 0)),
        compiler_params=_mosaic_params(
            tm, E + NPAD, 2, (E * H + H * NPAD) * 2 + (H + NPAD) * 4),
    )(x, token_z, w1, b1.reshape(1, H), w2p, b2p.reshape(1, NPAD))
    return out[:M, 0].astype(jnp.float32), out[:M, 1].astype(jnp.float32)


def proj_sent_logits(context_reps, question_rep, cw, cb, qw, qb):
    """sent_logits = ((ctx @ cw + cb) * (q @ qw + qb)).sum(-1).
    The question projection is computed ONCE (B rows, plain JAX) and broadcast;
    the kernel keeps only the context matmul + multiply + reduce."""
    B, Ns, K = context_reps.shape
    D = cw.shape[1]
    M = B * Ns
    qp = (jnp.dot(question_rep, qw, preferred_element_type=jnp.float32)
          + qb).astype(jnp.float32)                              # (B, D)
    qp_b = jnp.broadcast_to(qp[:, None, :], (B, Ns, D)).reshape(M, D)
    c = context_reps.reshape(M, K)

    tm = _pick_tm(M, K, D)
    m_pad = _round_up(M, 8)
    c = _pad_rows(c, m_pad)
    qp_b = _pad_rows(qp_b, m_pad)
    out = pl.pallas_call(
        _ctx_proj_sent_logits_kernel,
        out_shape=jax.ShapeDtypeStruct((m_pad, 1), jnp.float32),
        grid=(pl.cdiv(m_pad, tm),),
        in_specs=[
            pl.BlockSpec((tm, K), lambda i: (i, 0)),
            pl.BlockSpec((tm, D), lambda i: (i, 0)),
            pl.BlockSpec((K, D), lambda i: (0, 0)),
            pl.BlockSpec((1, D), lambda i: (0, 0)),
        ],
        out_specs=pl.BlockSpec((tm, 1), lambda i: (i, 0)),
        compiler_params=_mosaic_params(tm, K, D + 2, K * D * 2 + D * 4),
    )(c, qp_b, cw, cb.reshape(1, D))
    return out[:M, 0].reshape(B, Ns)


# ----------------------------------------------------------------------------
# Model pieces (parameters + forward), mirroring SpectraSQUADModel.forward
# ----------------------------------------------------------------------------
def init_params(key, vocab, emb_dim, hidden, proj_dim=128, head_pad=128):
    ks = jax.random.split(key, 8)
    s = 0.02
    dec_w2 = jax.random.normal(ks[6], (hidden, 2), jnp.float32) * s
    return dict(
        # weights/embeddings stored in bf16 once (HBM-side cast); biases f32
        enc_emb=(jax.random.normal(ks[0], (vocab, emb_dim), jnp.float32) * s).astype(_BF16),
        enc_w=(jax.random.normal(ks[1], (emb_dim, hidden), jnp.float32) * s).astype(_BF16),
        enc_b=jnp.zeros((hidden,), jnp.float32),
        q_proj_w=(jax.random.normal(ks[2], (2 * hidden, proj_dim), jnp.float32) * s).astype(_BF16),
        q_proj_b=jnp.zeros((proj_dim,), jnp.float32),
        c_proj_w=(jax.random.normal(ks[3], (2 * hidden, proj_dim), jnp.float32) * s).astype(_BF16),
        c_proj_b=jnp.zeros((proj_dim,), jnp.float32),
        dec_emb=(jax.random.normal(ks[4], (vocab, emb_dim), jnp.float32) * s).astype(_BF16),
        dec_w1=(jax.random.normal(ks[5], (emb_dim, hidden), jnp.float32) * s).astype(_BF16),
        dec_b1=jnp.zeros((hidden,), jnp.float32),
        # head padded to 128 lanes once at init (cols 0/1 real, rest zero)
        dec_w2=jnp.pad(dec_w2, ((0, 0), (0, head_pad - 2))).astype(_BF16),
        dec_b2=jnp.zeros((head_pad,), jnp.float32),
    )


def encode_question_and_context(params, q_ids, q_mask, c_ids, c_mask,
                                q_starts, q_ends, c_starts, c_ends):
    """Synthetic SentenceLevelEncoder (reference class not provided): token MLP
    then [start; end] span reps (2H).  Question + context rows run through ONE
    fused masked_linear_act pallas_call (shared weights, one launch)."""
    B, Sq = q_ids.shape
    _, Sc = c_ids.shape
    emb_q = params["enc_emb"][q_ids]                      # (B, Sq, E) bf16 gather
    emb_c = params["enc_emb"][c_ids]                      # (B, Sc, E) bf16 gather
    E = emb_q.shape[-1]
    x = jnp.concatenate([emb_q.reshape(B * Sq, E), emb_c.reshape(B * Sc, E)], axis=0)
    mask = jnp.concatenate(
        [q_mask.astype(jnp.float32).reshape(B * Sq, 1),
         c_mask.astype(jnp.float32).reshape(B * Sc, 1)], axis=0)
    hidden = masked_linear_act(x, mask, params["enc_w"], params["enc_b"],
                               activation="tanh", out_dtype=_BF16)
    hq = hidden[:B * Sq].reshape(B, Sq, -1)
    hc = hidden[B * Sq:].reshape(B, Sc, -1)

    def span_reps(h, starts, ends, s_len):
        start_idx = jnp.clip(starts, 0, s_len - 1)
        end_idx = jnp.clip(ends - 1, 0, s_len - 1)
        h_start = jnp.take_along_axis(h, start_idx[..., None], axis=1)
        h_end = jnp.take_along_axis(h, end_idx[..., None], axis=1)
        return jnp.concatenate([h_start, h_end], axis=-1)   # (B, Nspan, 2H) bf16

    question_rep = span_reps(hq, q_starts, q_ends, Sq)       # (B, 1, 2H)
    context_reps = span_reps(hc, c_starts, c_ends, Sc)       # (B, Ns, 2H)
    return question_rep, context_reps


def create_sent_mask(sent_lengths, max_sent_length):
    return (
        jnp.arange(max_sent_length)[None, :] < sent_lengths[:, None]
    ).astype(jnp.float32)


def sample_z(sent_logits, sent_mask, temperature):
    # TODO(synk): reference solves an LP-SparseMAP Budget factor graph
    # (TorchFactorGraph + Budget); no clean Pallas equivalent, so approximated
    # with a masked sigmoid relaxation of scores / temperature.
    scores = jnp.where(sent_mask > 0, sent_logits, -1000.0)
    return jax.nn.sigmoid(scores / temperature) * sent_mask


def convert_z_to_token_level(z, sent_starts, sent_ends, question_end_positions, max_length):
    """Fixed-shape equivalent of the per-example repeat_interleave + pad loop."""
    B, Ns = z.shape
    sent_token_lengths = (sent_ends - sent_starts).astype(jnp.int32)  # (B, Ns)
    cum = jnp.cumsum(sent_token_lengths, axis=-1)                     # (B, Ns)
    offsets = question_end_positions[:, None] + jnp.concatenate(
        [jnp.zeros((B, 1), jnp.int32), cum[:, :-1]], axis=-1
    )                                                                 # (B, Ns)
    last_pos = question_end_positions + cum[:, -1]                    # (B,)
    t = jnp.arange(max_length, dtype=jnp.int32)[None, :]              # (1, L)
    sent_idx = jnp.sum(t[:, :, None] >= offsets[:, None, :], axis=-1) - 1  # (B, L)
    sent_idx = jnp.clip(sent_idx, 0, Ns - 1)
    z_tok = jnp.take_along_axis(z, sent_idx, axis=-1)                 # (B, L)
    mask = jnp.where(t < question_end_positions[:, None], 1.0, z_tok)
    mask = jnp.where(t >= last_pos[:, None], 0.0, mask)
    mask = jnp.where(t == last_pos[:, None], 1.0, mask)
    return mask


def qa_decoder(params, input_ids, token_z, start_positions, end_positions):
    """Synthetic QADecoder (reference class not provided): masked embeddings ->
    fused MLP + logit head (single Pallas kernel) + CE loss."""
    B, S = input_ids.shape
    emb = params["dec_emb"][input_ids]                                # (B, S, E) bf16
    E = emb.shape[-1]
    start_flat, end_flat = qa_decoder_fused(
        emb.reshape(B * S, E), token_z.reshape(B * S, 1).astype(jnp.float32),
        params["dec_w1"], params["dec_b1"], params["dec_w2"], params["dec_b2"])
    start_logits = start_flat.reshape(B, S)
    end_logits = end_flat.reshape(B, S)

    def ce(lg, pos):
        logz = jax.nn.logsumexp(lg, axis=-1)
        gold = jnp.take_along_axis(lg, pos[:, None], axis=-1)[:, 0]
        return jnp.mean(logz - gold)

    loss = 0.5 * (ce(start_logits, start_positions) + ce(end_logits, end_positions))
    return loss, start_logits, end_logits


def calc_sent_rationale_loss(sent_logits, gold_sent_positions, sent_mask, flexible_gold):
    B, Ns = sent_logits.shape
    rationale = jnp.full((B, Ns), flexible_gold[0], jnp.float32)
    rationale = rationale.at[jnp.arange(B), gold_sent_positions].set(flexible_gold[1])
    active = (sent_mask.reshape(-1) == 1).astype(jnp.float32)
    lg = sent_logits.reshape(-1)
    lb = rationale.reshape(-1)
    # binary_cross_entropy_with_logits, mean over active positions
    per = jnp.maximum(lg, 0.0) - lg * lb + jnp.log1p(jnp.exp(-jnp.abs(lg)))
    return jnp.sum(per * active) / jnp.maximum(jnp.sum(active), 1.0)


def spectra_squad_forward(params, batch, args, mode="train"):
    input_ids = batch["input_ids"]
    labels = batch["labels"]
    start_positions = labels[:, 0]
    end_positions = labels[:, 1]
    sent_starts = batch["sent_starts"]
    sent_ends = batch["sent_ends"]
    sent_lengths = batch["sent_lengths"]
    question_end_positions = batch["question_end_positions"]
    gold_sent_positions = batch["gold_sent_positions"]
    B = input_ids.shape[0]

    # Single fused encoder launch over question + context token rows.
    question_rep, context_reps = encode_question_and_context(
        params,
        batch["question_input_ids"], batch["question_attn_mask"],
        batch["context_input_ids"], batch["context_attn_mask"],
        sent_starts[:, 0:1], sent_ends[:, 0:1],
        sent_starts[:, 1:], sent_ends[:, 1:])

    # Context projection + dot-reduce in one kernel; question projection is
    # computed once per batch row in plain JAX (trivial).
    sent_logits = proj_sent_logits(
        context_reps, question_rep[:, 0, :],
        params["c_proj_w"], params["c_proj_b"],
        params["q_proj_w"], params["q_proj_b"])                       # (B, Ns)

    sent_mask = create_sent_mask(sent_lengths, batch["max_sent_length"])  # (B, Ns)
    sent_z = sample_z(sent_logits, sent_mask, args["temperature"])        # (B, Ns)
    token_z = convert_z_to_token_level(
        sent_z, sent_starts[:, 1:], sent_ends[:, 1:], question_end_positions,
        args["max_length"])                                               # (B, L)

    pred_loss, start_logits, end_logits = qa_decoder(
        params, input_ids, token_z, start_positions, end_positions)

    gold_sent_probs = sent_z[jnp.arange(B), gold_sent_positions]

    if args["use_gold_rationale"] and mode == "train":
        sent_rationale_loss = calc_sent_rationale_loss(
            sent_logits, gold_sent_positions, sent_mask, args["flexible_gold"])
        loss = pred_loss + args["gamma"] * sent_rationale_loss
    else:
        sent_rationale_loss = jnp.zeros_like(pred_loss)
        loss = pred_loss

    return {
        "loss": loss,
        "pred_loss": pred_loss,
        "start_logits": start_logits,
        "end_logits": end_logits,
        "token_z": token_z,
        "sent_z": sent_z,
        "gold_sent_probs": gold_sent_probs,
        "sent_rationale_loss": sent_rationale_loss,
    }


# ----------------------------------------------------------------------------
# Demo
# ----------------------------------------------------------------------------
if __name__ == "__main__":
    key = jax.random.PRNGKey(0)
    k_param, k_ids, k_qids, k_cids = jax.random.split(key, 4)

    B, L, Sq, Sc = 2, 64, 16, 48
    VOCAB, E, H = 100, 128, 128   # 128-lane-aligned feature dims
    NS = 6  # max context sentences

    args = dict(
        encoder_hidden_size=H,
        dropout_rate=0.1,
        max_length=L,
        budget_ratio=0.5,
        budget=None,
        temperature=0.5,
        solver_iter=100,
        use_gold_rationale=True,
        gamma=1.0,
        flexible_gold=(0.1, 0.9),
        dataparallel=True,
    )

    params = init_params(k_param, VOCAB, E, H)

    batch = {
        "input_ids": jax.random.randint(k_ids, (B, L), 0, VOCAB, jnp.int32),
        "attention_mask": jnp.ones((B, L), jnp.int32),
        "question_input_ids": jax.random.randint(k_qids, (B, Sq), 0, VOCAB, jnp.int32),
        "question_attn_mask": jnp.ones((B, Sq), jnp.int32),
        "context_input_ids": jax.random.randint(k_cids, (B, Sc), 0, VOCAB, jnp.int32),
        "context_attn_mask": jnp.ones((B, Sc), jnp.int32),
        "labels": jnp.array([[20, 25], [18, 22]], jnp.int32),
        # column 0 = question span, columns 1.. = context sentence spans
        "sent_starts": jnp.array(
            [[0, 0, 5, 10, 15, 20, 25], [0, 0, 8, 14, 18, 24, 24]], jnp.int32),
        "sent_ends": jnp.array(
            [[14, 5, 10, 15, 20, 25, 30], [10, 8, 14, 18, 24, 24, 24]], jnp.int32),
        "sent_lengths": jnp.array([6, 4], jnp.int32),
        "question_end_positions": jnp.array([16, 12], jnp.int32),
        "gold_sent_positions": jnp.array([2, 1], jnp.int32),
        "max_sent_length": NS,
    }

    out = spectra_squad_forward(params, batch, args, mode="train")
    jax.block_until_ready(out["loss"])
    assert out["start_logits"].shape == (B, L)
    assert out["end_logits"].shape == (B, L)
    assert out["sent_z"].shape == (B, NS)
    assert out["token_z"].shape == (B, L)
    assert bool(jnp.isfinite(out["loss"]))
    print("KERNEL_OK")
</pallas_src>

<mosaic_0001>
module attributes {stable_mosaic.version = 11 : i64} {
  func.func @_masked_linear_act_kernel(%arg0: i32, %arg1: memref<128x128xbf16, #tpu.memory_space<vmem>>, %arg2: memref<128x1xf32, #tpu.memory_space<vmem>>, %arg3: memref<128x128xbf16, #tpu.memory_space<vmem>>, %arg4: memref<1x128xf32, #tpu.memory_space<vmem>>, %arg5: memref<128x128xbf16, #tpu.memory_space<vmem>>) attributes {dimension_semantics = [#tpu.dimension_semantics<parallel>], iteration_bounds = array<i64: 1>, scalar_prefetch = 0 : i64, scratch_operands = 0 : i64, tpu.core_type = #tpu.core_type<tc>, window_params = [{transform_indices = @transform_0, window_bounds = array<i64: 128, 128>}, {transform_indices = @transform_1, window_bounds = array<i64: 128, 1>}, {pipeline_mode = #tpu.pipeline_mode<synchronous>, transform_indices = @transform_2, window_bounds = array<i64: 128, 128>}, {pipeline_mode = #tpu.pipeline_mode<synchronous>, transform_indices = @transform_3, window_bounds = array<i64: 1, 128>}, {transform_indices = @transform_4, window_bounds = array<i64: 128, 128>}]} {
    %c0 = arith.constant 0 : index
    %c0_0 = arith.constant 0 : index
    %0 = vector.load %arg1[%c0, %c0_0] : memref<128x128xbf16, #tpu.memory_space<vmem>>, vector<128x128xbf16>
    %c0_1 = arith.constant 0 : index
    %c0_2 = arith.constant 0 : index
    %1 = vector.load %arg2[%c0_1, %c0_2] : memref<128x1xf32, #tpu.memory_space<vmem>>, vector<128x1xf32>
    %2 = arith.truncf %1 : vector<128x1xf32> to vector<128x1xbf16>
    %3 = vector.broadcast %2 : vector<128x1xbf16> to vector<128x128xbf16>
    %4 = arith.mulf %0, %3 : vector<128x128xbf16>
    %c0_3 = arith.constant 0 : index
    %c0_4 = arith.constant 0 : index
    %5 = vector.load %arg3[%c0_3, %c0_4] : memref<128x128xbf16, #tpu.memory_space<vmem>>, vector<128x128xbf16>
    %cst = arith.constant dense<0.000000e+00> : vector<128x128xf32>
    %6 = tpu.matmul %4, %5, %cst {dimension_numbers = #tpu.dot_dimension_numbers<[1], [0], [0], [1], [0, 0, 1, 1], [], []>} : vector<128x128xbf16>, vector<128x128xbf16>, vector<128x128xf32> -> vector<128x128xf32>
    %c0_5 = arith.constant 0 : index
    %c0_6 = arith.constant 0 : index
    %7 = vector.load %arg4[%c0_5, %c0_6] : memref<1x128xf32, #tpu.memory_space<vmem>>, vector<1x128xf32>
    %8 = vector.broadcast %7 : vector<1x128xf32> to vector<128x128xf32>
    %9 = arith.addf %6, %8 : vector<128x128xf32>
    %10 = math.tanh %9 : vector<128x128xf32>
    %11 = arith.truncf %10 : vector<128x128xf32> to vector<128x128xbf16>
    %c0_7 = arith.constant 0 : index
    %c0_8 = arith.constant 0 : index
    %12 = vector.load %arg5[%c0_7, %c0_8] : memref<128x128xbf16, #tpu.memory_space<vmem>>, vector<128x128xbf16>
    tpu.vector_store %arg5[%c0_7, %c0_8], %11 {strides = array<i32>} : memref<128x128xbf16, #tpu.memory_space<vmem>>, vector<128x128xbf16>,
    return
  }
  func.func @transform_0(%arg0: i32) -> (i32, i32) {
    %c0_i32 = arith.constant 0 : i32
    %c0_i32_0 = arith.constant 0 : i32
    return %arg0, %c0_i32 : i32, i32
  }
  func.func @transform_1(%arg0: i32) -> (i32, i32) {
    %c0_i32 = arith.constant 0 : i32
    %c0_i32_0 = arith.constant 0 : i32
    return %arg0, %c0_i32 : i32, i32
  }
  func.func @transform_2(%arg0: i32) -> (i32, i32) {
    %c0_i32 = arith.constant 0 : i32
    %c0_i32_0 = arith.constant 0 : i32
    %c0_i32_1 = arith.constant 0 : i32
    return %c0_i32, %c0_i32_0 : i32, i32
  }
  func.func @transform_3(%arg0: i32) -> (i32, i32) {
    %c0_i32 = arith.constant 0 : i32
    %c0_i32_0 = arith.constant 0 : i32
    %c0_i32_1 = arith.constant 0 : i32
    return %c0_i32, %c0_i32_0 : i32, i32
  }
  func.func @transform_4(%arg0: i32) -> (i32, i32) {
    %c0_i32 = arith.constant 0 : i32
    %c0_i32_0 = arith.constant 0 : i32
    return %arg0, %c0_i32 : i32, i32
  }
}

</mosaic_0001>

<llo_original>
// kernel: tpu_custom_call.1
$region0: #{tpu_custom_call.1}
  #allocation0 [shape = 'u32[]', space=smem, size = 0x4, offset = 0x4, fixed_abs, tag = 'smem constant byte address 0x4 - core index']
  #allocation1 [shape = 'u32[144,128]{1,0:T(1,128)}', space=vmem, size = 0x12000, scoped, tag = 'internal scratch']
  %s0 = inlined_call_operand.vmem [shape: bf16[128,128], index: 0, kind: input, shape index: {}]
  %s1 = inlined_call_operand.vmem [shape: f32[128,1], index: 1, kind: input, shape index: {}]
  %s2 = inlined_call_operand.vmem [shape: bf16[128,128], index: 2, kind: input, shape index: {}]
  %s3 = inlined_call_operand.vmem [shape: f32[1,128], index: 3, kind: input, shape index: {}]
  %s4 = inlined_call_operand.hbm [shape: bf16[128,128], index: 4, kind: output, shape index: {}]
  %s5 = sld [smem:[#allocation0]]
  $region26: #{tpu_custom_call.1} parent=0
    _
  %s7 = ssub.s32 1, %s5
  %s8 = scalar_select 0, %s7, %s5
  $region1: #{tpu_custom_call.1} parent=0
    #allocation2 [shape = 'u8[32768]{0}', space=vmem, size = 0x8000, scoped, tag = 'output window, operand 0, single buffered']
    #allocation3 [shape = 's32[1]{0}', space=sflag, size = 0x4, scoped, tag = 'scoped memory for tpu_custom_call.1']
    %9 = vsyncpa [#allocation3], 0
    // Predicated region
    $region2: #{tpu_custom_call.1} parent=1 // pred_check
      _
    $region3: #{tpu_custom_call.1} parent=1 // pred_check_branch
      %11 = sbr.rel (0) target = $region5
    $region4: #{tpu_custom_call.1} parent=1 // pred_region
      _
    $region5: #{tpu_custom_call.1} parent=1 // pred_fallthru
      _
    // Predicated region
    $region6: #{tpu_custom_call.1} parent=1 // pred_check
      _
    $region7: #{tpu_custom_call.1} parent=1 // pred_check_branch
      %13 = sbr.rel (0) target = $region9
    $region8: #{tpu_custom_call.1} parent=1 // pred_region
      _
    $region9: #{tpu_custom_call.1} parent=1 // pred_fallthru
      _
    // Predicated region
    $region10: #{tpu_custom_call.1} parent=1 // pred_check
      _
    $region11: #{tpu_custom_call.1} parent=1 // pred_check_branch
      %15 = sbr.rel (0) target = $region13
    $region12: #{tpu_custom_call.1} parent=1 // pred_region
      _
    $region13: #{tpu_custom_call.1} parent=1 // pred_fallthru
      _
    // Predicated region
    $region14: #{tpu_custom_call.1} parent=1 // pred_check
      _
    $region15: #{tpu_custom_call.1} parent=1 // pred_check_branch
      %17 = sbr.rel (0) target = $region17
    $region16: #{tpu_custom_call.1} parent=1 // pred_region
      _
    $region17: #{tpu_custom_call.1} parent=1 // pred_fallthru
      _
    %v19 = vld [vmem:[%s0] sm:$0xf]
    %v20 = vld [vmem:[%s0 + $0x4] sm:$0xf]
    %v21 = vld [vmem:[%s0 + $0x8] sm:$0xf]
    %v22 = vld [vmem:[%s0 + $0xc] sm:$0xf]
    %v23 = vld [vmem:[%s0 + $0x10] sm:$0xf]
    %v24 = vld [vmem:[%s0 + $0x14] sm:$0xf]
    %v25 = vld [vmem:[%s0 + $0x18] sm:$0xf]
    %v26 = vld [vmem:[%s0 + $0x1c] sm:$0xf]
    %v27 = vld [vmem:[%s0 + $0x20] sm:$0xf]
    %v28 = vld [vmem:[%s0 + $0x24] sm:$0xf]
    %v29 = vld [vmem:[%s0 + $0x28] sm:$0xf]
    %v30 = vld [vmem:[%s0 + $0x2c] sm:$0xf]
    %v31 = vld [vmem:[%s0 + $0x30] sm:$0xf]
    %v32 = vld [vmem:[%s0 + $0x34] sm:$0xf]
    %v33 = vld [vmem:[%s0 + $0x38] sm:$0xf]
    %v34 = vld [vmem:[%s0 + $0x3c] sm:$0xf]
    %v35 = vld [vmem:[%s1] sm:$0xff]
    %v36 = vld [vmem:[%s1 + $0x8] sm:$0xff]
    %v37 = vld [vmem:[%s1 + $0x10] sm:$0xff]
    %v38 = vld [vmem:[%s1 + $0x18] sm:$0xff]
    %v39 = vld [vmem:[%s1 + $0x20] sm:$0xff]
    %v40 = vld [vmem:[%s1 + $0x28] sm:$0xff]
    %v41 = vld [vmem:[%s1 + $0x30] sm:$0xff]
    %v42 = vld [vmem:[%s1 + $0x38] sm:$0xff]
    %v43 = vld [vmem:[%s1 + $0x40] sm:$0xff]
    %v44 = vld [vmem:[%s1 + $0x48] sm:$0xff]
    %v45 = vld [vmem:[%s1 + $0x50] sm:$0xff]
    %v46 = vld [vmem:[%s1 + $0x58] sm:$0xff]
    %v47 = vld [vmem:[%s1 + $0x60] sm:$0xff]
    %v48 = vld [vmem:[%s1 + $0x68] sm:$0xff]
    %v49 = vld [vmem:[%s1 + $0x70] sm:$0xff]
    %v50 = vld [vmem:[%s1 + $0x78] sm:$0xff]
    %v51 = vpack.c.bf16 %v36, %v35
    %v52 = vpack.c.bf16 %v38, %v37
    %v53 = vpack.c.bf16 %v40, %v39
    %v54 = vpack.c.bf16 %v42, %v41
    %v55 = vpack.c.bf16 %v44, %v43
    %v56 = vpack.c.bf16 %v46, %v45
    %v57 = vpack.c.bf16 %v48, %v47
    %v58 = vpack.c.bf16 %v50, %v49
    %60 = vset.pattern.permute.xlu0 0
    %61 = vperm.xlu0 %60, %v51
    %v62 = vpop.permute.xlu0 %61
    %64 = vset.pattern.permute.xlu0 0
    %65 = vperm.xlu0 %64, %v52
    %v66 = vpop.permute.xlu0 %65
    %68 = vset.pattern.permute.xlu0 0
    %69 = vperm.xlu0 %68, %v53
    %v70 = vpop.permute.xlu0 %69
    %72 = vset.pattern.permute.xlu0 0
    %73 = vperm.xlu0 %72, %v54
    %v74 = vpop.permute.xlu0 %73
    %76 = vset.pattern.permute.xlu0 0
    %77 = vperm.xlu0 %76, %v55
    %v78 = vpop.permute.xlu0 %77
    %80 = vset.pattern.permute.xlu0 0
    %81 = vperm.xlu0 %80, %v56
    %v82 = vpop.permute.xlu0 %81
    %84 = vset.pattern.permute.xlu0 0
    %85 = vperm.xlu0 %84, %v57
    %v86 = vpop.permute.xlu0 %85
    %88 = vset.pattern.permute.xlu0 0
    %89 = vperm.xlu0 %88, %v58
    %v90 = vpop.permute.xlu0 %89
    %v100 = vunpack.c.l.s4 839922192
    %v101 = vunpack.c.0.s8 %v100
    %v102 = vlaneseq
    %v103 = vshrl.u32 %v102, 7
    %v104 = vsub.s32 %v101, %v103
    %v105 = vrot.slane %v62, %v104
    %v107 = vunpack.c.l.s4 1985246804
    %v108 = vunpack.c.0.s8 %v107
    %v109 = vlaneseq
    %v110 = vshrl.u32 %v109, 7
    %v111 = vsub.s32 %v108, %v110
    %v112 = vrot.slane %v62, %v111
    %v114 = vunpack.c.l.s4 839922192
    %v115 = vunpack.c.0.s8 %v114
    %v116 = vlaneseq
    %v117 = vshrl.u32 %v116, 7
    %v118 = vsub.s32 %v115, %v117
    %v119 = vrot.slane %v66, %v118
    %v121 = vunpack.c.l.s4 1985246804
    %v122 = vunpack.c.0.s8 %v121
    %v123 = vlaneseq
    %v124 = vshrl.u32 %v123, 7
    %v125 = vsub.s32 %v122, %v124
    %v126 = vrot.slane %v66, %v125
    %v128 = vunpack.c.l.s4 839922192
    %v129 = vunpack.c.0.s8 %v128
    %v130 = vlaneseq
    %v131 = vshrl.u32 %v130, 7
    %v132 = vsub.s32 %v129, %v131
    %v133 = vrot.slane %v70, %v132
    %v135 = vunpack.c.l.s4 1985246804
    %v136 = vunpack.c.0.s8 %v135
    %v137 = vlaneseq
    %v138 = vshrl.u32 %v137, 7
    %v139 = vsub.s32 %v136, %v138
    %v140 = vrot.slane %v70, %v139
    %v142 = vunpack.c.l.s4 839922192
    %v143 = vunpack.c.0.s8 %v142
    %v144 = vlaneseq
    %v145 = vshrl.u32 %v144, 7
    %v146 = vsub.s32 %v143, %v145
    %v147 = vrot.slane %v74, %v146
    %v149 = vunpack.c.l.s4 1985246804
    %v150 = vunpack.c.0.s8 %v149
    %v151 = vlaneseq
    %v152 = vshrl.u32 %v151, 7
    %v153 = vsub.s32 %v150, %v152
    %v154 = vrot.slane %v74, %v153
    %v156 = vunpack.c.l.s4 839922192
    %v157 = vunpack.c.0.s8 %v156
    %v158 = vlaneseq
    %v159 = vshrl.u32 %v158, 7
    %v160 = vsub.s32 %v157, %v159
    %v161 = vrot.slane %v78, %v160
    %v163 = vunpack.c.l.s4 1985246804
    %v164 = vunpack.c.0.s8 %v163
    %v165 = vlaneseq
    %v166 = vshrl.u32 %v165, 7
    %v167 = vsub.s32 %v164, %v166
    %v168 = vrot.slane %v78, %v167
    %v170 = vunpack.c.l.s4 839922192
    %v171 = vunpack.c.0.s8 %v170
    %v172 = vlaneseq
    %v173 = vshrl.u32 %v172, 7
    %v174 = vsub.s32 %v171, %v173
    %v175 = vrot.slane %v82, %v174
    %v177 = vunpack.c.l.s4 1985246804
    %v178 = vunpack.c.0.s8 %v177
    %v179 = vlaneseq
    %v180 = vshrl.u32 %v179, 7
    %v181 = vsub.s32 %v178, %v180
    %v182 = vrot.slane %v82, %v181
    %v184 = vunpack.c.l.s4 839922192
    %v185 = vunpack.c.0.s8 %v184
    %v186 = vlaneseq
    %v187 = vshrl.u32 %v186, 7
    %v188 = vsub.s32 %v185, %v187
    %v189 = vrot.slane %v86, %v188
    %v191 = vunpack.c.l.s4 1985246804
    %v192 = vunpack.c.0.s8 %v191
    %v193 = vlaneseq
    %v194 = vshrl.u32 %v193, 7
    %v195 = vsub.s32 %v192, %v194
    %v196 = vrot.slane %v86, %v195
    %v198 = vunpack.c.l.s4 839922192
    %v199 = vunpack.c.0.s8 %v198
    %v200 = vlaneseq
    %v201 = vshrl.u32 %v200, 7
    %v202 = vsub.s32 %v199, %v201
    %v203 = vrot.slane %v90, %v202
    %v205 = vunpack.c.l.s4 1985246804
    %v206 = vunpack.c.0.s8 %v205
    %v207 = vlaneseq
    %v208 = vshrl.u32 %v207, 7
    %v209 = vsub.s32 %v206, %v208
    %v210 = vrot.slane %v90, %v209
    %v227 = vmul.bf16 %v19, %v105
    %v228 = vmul.bf16 %v20, %v112
    %v229 = vmul.bf16 %v21, %v119
    %v230 = vmul.bf16 %v22, %v126
    %v231 = vmul.bf16 %v23, %v133
    %v232 = vmul.bf16 %v24, %v140
    %v233 = vmul.bf16 %v25, %v147
    %v234 = vmul.bf16 %v26, %v154
    %v235 = vmul.bf16 %v27, %v161
    %v236 = vmul.bf16 %v28, %v168
    %v237 = vmul.bf16 %v29, %v175
    %v238 = vmul.bf16 %v30, %v182
    %v239 = vmul.bf16 %v31, %v189
    %v240 = vmul.bf16 %v32, %v196
    %v241 = vmul.bf16 %v33, %v203
    %v242 = vmul.bf16 %v34, %v210
    %v243 = vld [vmem:[%s2] sm:$0xf]
    %v244 = vld [vmem:[%s2 + $0x4] sm:$0xf]
    %v245 = vld [vmem:[%s2 + $0x8] sm:$0xf]
    %v246 = vld [vmem:[%s2 + $0xc] sm:$0xf]
    %v247 = vld [vmem:[%s2 + $0x10] sm:$0xf]
    %v248 = vld [vmem:[%s2 + $0x14] sm:$0xf]
    %v249 = vld [vmem:[%s2 + $0x18] sm:$0xf]
    %v250 = vld [vmem:[%s2 + $0x1c] sm:$0xf]
    %v251 = vld [vmem:[%s2 + $0x20] sm:$0xf]
    %v252 = vld [vmem:[%s2 + $0x24] sm:$0xf]
    %v253 = vld [vmem:[%s2 + $0x28] sm:$0xf]
    %v254 = vld [vmem:[%s2 + $0x2c] sm:$0xf]
    %v255 = vld [vmem:[%s2 + $0x30] sm:$0xf]
    %v256 = vld [vmem:[%s2 + $0x34] sm:$0xf]
    %v257 = vld [vmem:[%s2 + $0x38] sm:$0xf]
    %v258 = vld [vmem:[%s2 + $0x3c] sm:$0xf]
    %v259 = vld [vmem:[%s3] sm:$0x1]
    %v261 = vlaneseq
    %v262 = vshrl.u32 %v261, 7
    %v263 = vsub.s32 0, %v262
    %v264 = vrot.slane %v259, %v263
    %v282 = vunpack.c.l.b16 %v227
    %v283 = vunpack.c.l.b16 %v228
    %v284 = vunpack.c.l.b16 %v229
    %v285 = vunpack.c.l.b16 %v230
    %v286 = vunpack.c.l.b16 %v231
    %v287 = vunpack.c.l.b16 %v232
    %v288 = vunpack.c.l.b16 %v233
    %v289 = vunpack.c.l.b16 %v234
    %v290 = vunpack.c.l.b16 %v235
    %v291 = vunpack.c.l.b16 %v236
    %v292 = vunpack.c.l.b16 %v237
    %v293 = vunpack.c.l.b16 %v238
    %v294 = vunpack.c.l.b16 %v239
    %v295 = vunpack.c.l.b16 %v240
    %v296 = vunpack.c.l.b16 %v241
    %v297 = vunpack.c.l.b16 %v242
    %v298 = vpack.c.b16 %v283, %v282
    %v299 = vpack.c.b16 %v285, %v284
    %v300 = vpack.c.b16 %v287, %v286
    %v301 = vpack.c.b16 %v289, %v288
    %v302 = vpack.c.b16 %v291, %v290
    %v303 = vpack.c.b16 %v293, %v292
    %v304 = vpack.c.b16 %v295, %v294
    %v305 = vpack.c.b16 %v297, %v296
    %v330 = vunpack.c.l.b16 %v243
    %v331 = vunpack.c.l.b16 %v244
    %v332 = vunpack.c.l.b16 %v245
    %v333 = vunpack.c.l.b16 %v246
    %v334 = vunpack.c.l.b16 %v247
    %v335 = vunpack.c.l.b16 %v248
    %v336 = vunpack.c.l.b16 %v249
    %v337 = vunpack.c.l.b16 %v250
    %v338 = vunpack.c.l.b16 %v251
    %v339 = vunpack.c.l.b16 %v252
    %v340 = vunpack.c.l.b16 %v253
    %v341 = vunpack.c.l.b16 %v254
    %v342 = vunpack.c.l.b16 %v255
    %v343 = vunpack.c.l.b16 %v256
    %v344 = vunpack.c.l.b16 %v257
    %v345 = vunpack.c.l.b16 %v258
    %v346 = vpack.c.b16 %v331, %v330
    %v347 = vpack.c.b16 %v333, %v332
    %v348 = vpack.c.b16 %v335, %v334
    %v349 = vpack.c.b16 %v337, %v336
    %v350 = vpack.c.b16 %v339, %v338
    %v351 = vpack.c.b16 %v341, %v340
    %v352 = vpack.c.b16 %v343, %v342
    %v353 = vpack.c.b16 %v345, %v344
    %362 = vmatprep.subr.bf16.mxu0 0
    %363 = vmatpush1.bf16.msra.mxu0 %v346
    %364 = vmatprep.subr.bf16.mxu0 0
    %365 = vmatpush1.bf16.msra.mxu0 %v347
    %366 = vmatprep.subr.bf16.mxu0 0
    %367 = vmatpush1.bf16.msra.mxu0 %v348
    %368 = vmatprep.subr.bf16.mxu0 0
    %369 = vmatpush1.bf16.msra.mxu0 %v349
    %370 = vmatprep.subr.bf16.mxu0 0
    %371 = vmatpush1.bf16.msra.mxu0 %v350
    %372 = vmatprep.subr.bf16.mxu0 0
    %373 = vmatpush1.bf16.msra.mxu0 %v351
    %374 = vmatprep.subr.bf16.mxu0 0
    %375 = vmatpush1.bf16.msra.mxu0 %v352
    %376 = vmatprep.subr.bf16.mxu0 0
    %377 = vmatpush1.bf16.msra.mxu0 %v353
    %378 = vmatprep.subr.bf16.mxu0 0
    %379 = vmatpush1.bf16.msra.mxu0 0
    %380 = vmatprep.subr.bf16.mxu0 0
    %381 = vmatpush1.bf16.msra.mxu0 0
    %382 = vmatprep.subr.bf16.mxu0 0
    %383 = vmatpush1.bf16.msra.mxu0 0
    %384 = vmatprep.subr.bf16.mxu0 0
    %385 = vmatpush1.bf16.msra.mxu0 0
    %386 = vmatprep.subr.bf16.mxu0 0
    %387 = vmatpush1.bf16.msra.mxu0 0
    %388 = vmatprep.subr.bf16.mxu0 0
    %389 = vmatpush1.bf16.msra.mxu0 0
    %390 = vmatprep.subr.bf16.mxu0 0
    %391 = vmatpush1.bf16.msra.mxu0 0
    %392 = vmatprep.subr.bf16.mxu0 0
    %393 = vmatpush1.bf16.msra.mxu0 0
    %394 = vmatprep.mubr.bf16.mxu0 0
    %395 = vmatmul.mubr.bf16.gmra.mrb[0].mxu0 %v298
    %v396 = vpop.f32.mrb[0].mxu0
    %v397 = vadd.f32 %v264, %v396
    %v398 = vpop.f32.mrb[0].mxu0
    %v399 = vpop.f32.mrb[0].mxu0
    %v400 = vadd.f32 %v264, %v399
    %v401 = vpop.f32.mrb[0].mxu0
    %402 = vmatprep.mubr.bf16.mxu0 0
    %403 = vmatmul.mubr.bf16.gmra.mrb[0].mxu0 %v299
    %v404 = vpop.f32.mrb[0].mxu0
    %v405 = vadd.f32 %v264, %v404
    %v406 = vpop.f32.mrb[0].mxu0
    %v407 = vpop.f32.mrb[0].mxu0
    %v408 = vadd.f32 %v264, %v407
    %v409 = vpop.f32.mrb[0].mxu0
    %410 = vmatprep.mubr.bf16.mxu0 0
    %411 = vmatmul.mubr.bf16.gmra.mrb[0].mxu0 %v300
    %v412 = vpop.f32.mrb[0].mxu0
    %v413 = vadd.f32 %v264, %v412
    %v414 = vpop.f32.mrb[0].mxu0
    %v415 = vpop.f32.mrb[0].mxu0
    %v416 = vadd.f32 %v264, %v415
    %v417 = vpop.f32.mrb[0].mxu0
    %418 = vmatprep.mubr.bf16.mxu0 0
    %419 = vmatmul.mubr.bf16.gmra.mrb[0].mxu0 %v301
    %v420 = vpop.f32.mrb[0].mxu0
    %v421 = vadd.f32 %v264, %v420
    %v422 = vpop.f32.mrb[0].mxu0
    %v423 = vpop.f32.mrb[0].mxu0
    %v424 = vadd.f32 %v264, %v423
    %v425 = vpop.f32.mrb[0].mxu0
    %426 = vmatprep.mubr.bf16.mxu0 0
    %427 = vmatmul.mubr.bf16.gmra.mrb[0].mxu0 %v302
    %v428 = vpop.f32.mrb[0].mxu0
    %v429 = vadd.f32 %v264, %v428
    %v430 = vpop.f32.mrb[0].mxu0
    %v431 = vpop.f32.mrb[0].mxu0
    %v432 = vadd.f32 %v264, %v431
    %v433 = vpop.f32.mrb[0].mxu0
    %434 = vmatprep.mubr.bf16.mxu0 0
    %435 = vmatmul.mubr.bf16.gmra.mrb[0].mxu0 %v303
    %v436 = vpop.f32.mrb[0].mxu0
    %v437 = vadd.f32 %v264, %v436
    %v438 = vpop.f32.mrb[0].mxu0
    %v439 = vpop.f32.mrb[0].mxu0
    %v440 = vadd.f32 %v264, %v439
    %v441 = vpop.f32.mrb[0].mxu0
    %442 = vmatprep.mubr.bf16.mxu0 0
    %443 = vmatmul.mubr.bf16.gmra.mrb[0].mxu0 %v304
    %v444 = vpop.f32.mrb[0].mxu0
    %v445 = vadd.f32 %v264, %v444
    %v446 = vpop.f32.mrb[0].mxu0
    %v447 = vpop.f32.mrb[0].mxu0
    %v448 = vadd.f32 %v264, %v447
    %v449 = vpop.f32.mrb[0].mxu0
    %450 = vmatprep.mubr.bf16.mxu0 0
    %451 = vmatmul.mubr.bf16.gmra.mrb[0].mxu0 %v305
    %v452 = vpop.f32.mrb[0].mxu0
    %v453 = vadd.f32 %v264, %v452
    %v454 = vpop.f32.mrb[0].mxu0
    %v455 = vpop.f32.mrb[0].mxu0
    %v456 = vadd.f32 %v264, %v455
    %v457 = vpop.f32.mrb[0].mxu0
    %458 = vdwg.mxu0
    %v459 = vtanh.pop %v397
    %v460 = vtanh.pop %v400
    %v461 = vtanh.pop %v405
    %v462 = vtanh.pop %v408
    %v463 = vtanh.pop %v413
    %v464 = vtanh.pop %v416
    %v465 = vtanh.pop %v421
    %v466 = vtanh.pop %v424
    %v467 = vtanh.pop %v429
    %v468 = vtanh.pop %v432
    %v469 = vtanh.pop %v437
    %v470 = vtanh.pop %v440
    %v471 = vtanh.pop %v445
    %v472 = vtanh.pop %v448
    %v473 = vtanh.pop %v453
    %v474 = vtanh.pop %v456
    %v475 = vpack.c.bf16 %v460, %v459
    %v476 = vpack.c.bf16 %v462, %v461
    %v477 = vpack.c.bf16 %v464, %v463
    %v478 = vpack.c.bf16 %v466, %v465
    %v479 = vpack.c.bf16 %v468, %v467
    %v480 = vpack.c.bf16 %v470, %v469
    %v481 = vpack.c.bf16 %v472, %v471
    %v482 = vpack.c.bf16 %v474, %v473
    %v491 = vunpack.c.l.b16 %v475
    %v492 = vunpack.c.h.b16 %v475
    %v493 = vunpack.c.l.b16 %v476
    %v494 = vunpack.c.h.b16 %v476
    %v495 = vunpack.c.l.b16 %v477
    %v496 = vunpack.c.h.b16 %v477
    %v497 = vunpack.c.l.b16 %v478
    %v498 = vunpack.c.h.b16 %v478
    %v499 = vunpack.c.l.b16 %v479
    %v500 = vunpack.c.h.b16 %v479
    %v501 = vunpack.c.l.b16 %v480
    %v502 = vunpack.c.h.b16 %v480
    %v503 = vunpack.c.l.b16 %v481
    %v504 = vunpack.c.h.b16 %v481
    %v505 = vunpack.c.l.b16 %v482
    %v506 = vunpack.c.h.b16 %v482
    %v507 = vpack.c.b16 %v491, %v491
    %v508 = vpack.c.b16 %v492, %v492
    %v509 = vpack.c.b16 %v493, %v493
    %v510 = vpack.c.b16 %v494, %v494
    %v511 = vpack.c.b16 %v495, %v495
    %v512 = vpack.c.b16 %v496, %v496
    %v513 = vpack.c.b16 %v497, %v497
    %v514 = vpack.c.b16 %v498, %v498
    %v515 = vpack.c.b16 %v499, %v499
    %v516 = vpack.c.b16 %v500, %v500
    %v517 = vpack.c.b16 %v501, %v501
    %v518 = vpack.c.b16 %v502, %v502
    %v519 = vpack.c.b16 %v503, %v503
    %v520 = vpack.c.b16 %v504, %v504
    %v521 = vpack.c.b16 %v505, %v505
    %v522 = vpack.c.b16 %v506, %v506
    %539 = vst [vmem:[#allocation2] sm:$0xf] %v507
    %540 = vst [vmem:[#allocation2 + $0x4] sm:$0xf] %v508
    %541 = vst [vmem:[#allocation2 + $0x8] sm:$0xf] %v509
    %542 = vst [vmem:[#allocation2 + $0xc] sm:$0xf] %v510
    %543 = vst [vmem:[#allocation2 + $0x10] sm:$0xf] %v511
    %544 = vst [vmem:[#allocation2 + $0x14] sm:$0xf] %v512
    %545 = vst [vmem:[#allocation2 + $0x18] sm:$0xf] %v513
    %546 = vst [vmem:[#allocation2 + $0x1c] sm:$0xf] %v514
    %547 = vst [vmem:[#allocation2 + $0x20] sm:$0xf] %v515
    %548 = vst [vmem:[#allocation2 + $0x24] sm:$0xf] %v516
    %549 = vst [vmem:[#allocation2 + $0x28] sm:$0xf] %v517
    %550 = vst [vmem:[#allocation2 + $0x2c] sm:$0xf] %v518
    %551 = vst [vmem:[#allocation2 + $0x30] sm:$0xf] %v519
    %552 = vst [vmem:[#allocation2 + $0x34] sm:$0xf] %v520
    %553 = vst [vmem:[#allocation2 + $0x38] sm:$0xf] %v521
    %554 = vst [vmem:[#allocation2 + $0x3c] sm:$0xf] %v522
    // Predicated region
    $region18: #{tpu_custom_call.1} parent=1 // pred_check
      _
    $region19: #{tpu_custom_call.1} parent=1 // pred_check_branch
      %556 = sbr.rel (0) target = $region21
    $region20: #{tpu_custom_call.1} parent=1 // pred_region
      %s558 = ssub.s32 1024, 1024
      %559 = vsyncadd [#allocation3], %s558
      %s560 = sshll.u32 [#allocation2], 4
      %s561 = int_to_ptr.vmem [resolvable:$true] %s560
      %566 = dma.vmem_to_hbm [thread:$0]  %s561, 1024, %s4, [#allocation3], 64, 64, 4
    $region21: #{tpu_custom_call.1} parent=1 // pred_fallthru
      _
    // Predicated region
    $region22: #{tpu_custom_call.1} parent=1 // pred_check
      _
    $region23: #{tpu_custom_call.1} parent=1 // pred_check_branch
      %568 = sbr.rel (0) target = $region25
    $region24: #{tpu_custom_call.1} parent=1 // pred_region
      %569 = dma.done [#allocation3], 1024
    $region25: #{tpu_custom_call.1} parent=1 // pred_fallthru
      _
    %570 = vsyncpa [#allocation3], 1

</llo_original>
